<compile_context>
chip_gen: v6e
topology: v6e:2x2x1
jax: 0.10.0
libtpu: 0.0.40
codegen_flags: <defaults>
</compile_context>

<pallas_src>
import functools

import jax
import jax.numpy as jnp
from jax.experimental import pallas as pl
from jax.experimental.pallas import tpu as pltpu

LANE = 128
MAX_BLOCK_ROWS = 1024  # (1024, 128) f32 tile = 512 KiB; 2 inputs double-buffered = 2 MiB


def _focal_elementwise(x, t, alpha, gamma):
    """Per-element focal loss, f32 math, minimal transcendental count."""
    e = jnp.exp(-jnp.abs(x))                 # single exp per element
    inv = 1.0 / (1.0 + e)
    pos = x >= 0.0
    s = jnp.where(pos, 1.0, e) * inv         # sigmoid(x)
    one_m_s = jnp.where(pos, e, 1.0) * inv   # sigmoid(-x) == 1 - sigmoid(x)

    pt = one_m_s * t + s * (1.0 - t)

    g = float(gamma)
    if g.is_integer() and g >= 0:
        gi = int(g)
        if gi == 0:
            ptg = jnp.ones_like(pt)
        else:
            ptg = pt
            for _ in range(gi - 1):
                ptg = ptg * pt
    else:
        # TODO(synk): non-integer gamma uses pow (exp*log); pt==0 with
        # gamma<=0 would produce inf/NaN, matching the torch edge case.
        ptg = pt ** gamma

    fw = (alpha * t + (1.0 - alpha) * (1.0 - t)) * ptg
    # Stable binary_cross_entropy_with_logits: max(x,0) - x*t + log1p(exp(-|x|))
    bce = jnp.maximum(x, 0.0) - x * t + jnp.log1p(e)
    return bce * fw


def _focal_sum_kernel(pred_ref, tgt_ref, psum_ref, *, alpha, gamma,
                      total_n, block_rows, masked):
    x = pred_ref[...].astype(jnp.float32)
    t = tgt_ref[...].astype(jnp.float32)
    loss = _focal_elementwise(x, t, alpha, gamma)

    if masked:
        # Zero out zero-padded tail elements (exact, no extra HBM stream).
        base = pl.program_id(0) * (block_rows * LANE)
        row = jax.lax.broadcasted_iota(jnp.int32, x.shape, 0)
        lane = jax.lax.broadcasted_iota(jnp.int32, x.shape, 1)
        idx = base + row * LANE + lane
        loss = jnp.where(idx < total_n, loss, 0.0)

    # Per-block partial sum, kept lane-dense: (1, 128) per grid step.
    psum_ref[...] = jnp.sum(loss, axis=0, keepdims=True)


def _focal_none_kernel(pred_ref, tgt_ref, loss_ref, *, alpha, gamma):
    x = pred_ref[...].astype(jnp.float32)
    t = tgt_ref[...].astype(jnp.float32)
    # Padded tail (if any) is sliced off in the wrapper; no mask needed.
    loss_ref[...] = _focal_elementwise(x, t, alpha, gamma)


def focal_loss(pred, target, alpha=0.25, gamma=2.0, reduction='sum'):
    orig_shape = pred.shape
    n = int(pred.size)

    rows_needed = pl.cdiv(n, LANE)
    block_rows = min(MAX_BLOCK_ROWS, ((rows_needed + 7) // 8) * 8)
    num_blocks = pl.cdiv(rows_needed, block_rows)
    padded_rows = num_blocks * block_rows
    pad = padded_rows * LANE - n

    pred_flat = pred.reshape(-1)
    tgt_flat = target.reshape(-1)
    if pad > 0:
        pred_flat = jnp.pad(pred_flat, (0, pad))
        tgt_flat = jnp.pad(tgt_flat, (0, pad))
    pred2 = pred_flat.reshape(padded_rows, LANE)
    tgt2 = tgt_flat.reshape(padded_rows, LANE)

    tile_spec = pl.BlockSpec((block_rows, LANE), lambda i: (i, 0))
    cparams = pltpu.CompilerParams(dimension_semantics=("parallel",))

    if reduction in ('sum', 'mean'):
        psums = pl.pallas_call(
            functools.partial(_focal_sum_kernel, alpha=alpha, gamma=gamma,
                              total_n=n, block_rows=block_rows,
                              masked=(pad > 0)),
            out_shape=jax.ShapeDtypeStruct((num_blocks, LANE), jnp.float32),
            grid=(num_blocks,),
            in_specs=[tile_spec, tile_spec],
            out_specs=pl.BlockSpec((1, LANE), lambda i: (i, 0)),
            compiler_params=cparams,
        )(pred2, tgt2)
        total = jnp.sum(psums)
        if reduction == 'sum':
            return total
        return total / n

    # reduction == 'none'
    loss2 = pl.pallas_call(
        functools.partial(_focal_none_kernel, alpha=alpha, gamma=gamma),
        out_shape=jax.ShapeDtypeStruct((padded_rows, LANE), jnp.float32),
        grid=(num_blocks,),
        in_specs=[tile_spec, tile_spec],
        out_specs=tile_spec,
        compiler_params=cparams,
    )(pred2, tgt2)
    return loss2.reshape(-1)[:n].reshape(orig_shape)


def _focal_loss_ref(pred, target, alpha=0.25, gamma=2.0, reduction='sum'):
    """Pure-JAX reference replicating the PyTorch forward."""
    pred = pred.astype(jnp.float32)
    target = target.astype(jnp.float32)
    s = jax.nn.sigmoid(pred)
    pt = (1 - s) * target + s * (1 - target)
    fw = (alpha * target + (1 - alpha) * (1 - target)) * (pt ** gamma)
    bce = (jnp.maximum(pred, 0) - pred * target
           + jnp.log1p(jnp.exp(-jnp.abs(pred))))
    loss = bce * fw
    if reduction == 'sum':
        return loss.sum()
    elif reduction == 'mean':
        return loss.mean()
    return loss


if __name__ == "__main__":
    key = jax.random.PRNGKey(0)
    k_pred, k_tgt, k_pred2, k_tgt2 = jax.random.split(key, 4)

    # NCHW inputs consistent with a detection head: batch=2, channels=4, 16x16
    pred = jax.random.normal(k_pred, (2, 4, 16, 16), dtype=jnp.float32)
    target = (jax.random.uniform(k_tgt, (2, 4, 16, 16)) > 0.8).astype(jnp.float32)

    out_sum = jax.block_until_ready(focal_loss(pred, target, reduction='sum'))
    out_mean = jax.block_until_ready(focal_loss(pred, target, reduction='mean'))
    out_none = jax.block_until_ready(focal_loss(pred, target, reduction='none'))

    ref_sum = _focal_loss_ref(pred, target, reduction='sum')
    ref_mean = _focal_loss_ref(pred, target, reduction='mean')
    ref_none = _focal_loss_ref(pred, target, reduction='none')

    assert jnp.allclose(out_sum, ref_sum, rtol=1e-5, atol=1e-5)
    assert jnp.allclose(out_mean, ref_mean, rtol=1e-5, atol=1e-6)
    assert jnp.allclose(out_none, ref_none, rtol=1e-5, atol=1e-6)

    # Ragged shape (exercises the in-kernel iota mask on the padded tail).
    pred_r = jax.random.normal(k_pred2, (3, 5, 7), dtype=jnp.float32)
    target_r = (jax.random.uniform(k_tgt2, (3, 5, 7)) > 0.8).astype(jnp.float32)

    out_sum_r = jax.block_until_ready(focal_loss(pred_r, target_r, reduction='sum'))
    out_none_r = jax.block_until_ready(focal_loss(pred_r, target_r, reduction='none'))
    assert jnp.allclose(out_sum_r, _focal_loss_ref(pred_r, target_r, reduction='sum'),
                        rtol=1e-5, atol=1e-5)
    assert jnp.allclose(out_none_r, _focal_loss_ref(pred_r, target_r, reduction='none'),
                        rtol=1e-5, atol=1e-6)

    print("KERNEL_OK")
</pallas_src>

<mosaic_0001>
module attributes {stable_mosaic.version = 11 : i64} {
  func.func @_focal_sum_kernel(%arg0: i32, %arg1: memref<16x128xf32, #tpu.memory_space<vmem>>, %arg2: memref<16x128xf32, #tpu.memory_space<vmem>>, %arg3: memref<1x128xf32, #tpu.memory_space<vmem>>) attributes {dimension_semantics = [#tpu.dimension_semantics<parallel>], iteration_bounds = array<i64: 1>, scalar_prefetch = 0 : i64, scratch_operands = 0 : i64, tpu.core_type = #tpu.core_type<tc>, window_params = [{transform_indices = @transform_0, window_bounds = array<i64: 16, 128>}, {transform_indices = @transform_1, window_bounds = array<i64: 16, 128>}, {transform_indices = @transform_2, window_bounds = array<i64: 1, 128>}]} {
    %c0 = arith.constant 0 : index
    %c0_0 = arith.constant 0 : index
    %0 = vector.load %arg1[%c0, %c0_0] : memref<16x128xf32, #tpu.memory_space<vmem>>, vector<16x128xf32>
    %c0_1 = arith.constant 0 : index
    %c0_2 = arith.constant 0 : index
    %1 = vector.load %arg2[%c0_1, %c0_2] : memref<16x128xf32, #tpu.memory_space<vmem>>, vector<16x128xf32>
    %2 = math.absf %0 : vector<16x128xf32>
    %cst = arith.constant 0.000000e+00 : f32
    %3 = vector.broadcast %cst : f32 to vector<16x128xf32>
    %4 = arith.subf %3, %2 : vector<16x128xf32>
    %5 = math.exp %4 : vector<16x128xf32>
    %cst_3 = arith.constant 1.000000e+00 : f32
    %6 = vector.broadcast %cst_3 : f32 to vector<16x128xf32>
    %7 = arith.addf %6, %5 : vector<16x128xf32>
    %cst_4 = arith.constant 1.000000e+00 : f32
    %8 = vector.broadcast %cst_4 : f32 to vector<16x128xf32>
    %9 = arith.divf %8, %7 : vector<16x128xf32>
    %cst_5 = arith.constant 0.000000e+00 : f32
    %10 = vector.broadcast %cst_5 : f32 to vector<16x128xf32>
    %11 = arith.cmpf oge, %0, %10 : vector<16x128xf32>
    %cst_6 = arith.constant 1.000000e+00 : f32
    %12 = vector.broadcast %cst_6 : f32 to vector<16x128xf32>
    %13 = arith.select %11, %12, %5 : vector<16x128xi1>, vector<16x128xf32>
    %14 = arith.mulf %13, %9 : vector<16x128xf32>
    %cst_7 = arith.constant 1.000000e+00 : f32
    %15 = vector.broadcast %cst_7 : f32 to vector<16x128xf32>
    %16 = arith.select %11, %5, %15 : vector<16x128xi1>, vector<16x128xf32>
    %17 = arith.mulf %16, %9 : vector<16x128xf32>
    %18 = arith.mulf %17, %1 : vector<16x128xf32>
    %cst_8 = arith.constant 1.000000e+00 : f32
    %19 = vector.broadcast %cst_8 : f32 to vector<16x128xf32>
    %20 = arith.subf %19, %1 : vector<16x128xf32>
    %21 = arith.mulf %14, %20 : vector<16x128xf32>
    %22 = arith.addf %18, %21 : vector<16x128xf32>
    %23 = arith.mulf %22, %22 : vector<16x128xf32>
    %cst_9 = arith.constant 2.500000e-01 : f32
    %24 = vector.broadcast %cst_9 : f32 to vector<16x128xf32>
    %25 = arith.mulf %24, %1 : vector<16x128xf32>
    %cst_10 = arith.constant 1.000000e+00 : f32
    %26 = vector.broadcast %cst_10 : f32 to vector<16x128xf32>
    %27 = arith.subf %26, %1 : vector<16x128xf32>
    %cst_11 = arith.constant 7.500000e-01 : f32
    %28 = vector.broadcast %cst_11 : f32 to vector<16x128xf32>
    %29 = arith.mulf %28, %27 : vector<16x128xf32>
    %30 = arith.addf %25, %29 : vector<16x128xf32>
    %31 = arith.mulf %30, %23 : vector<16x128xf32>
    %cst_12 = arith.constant 0.000000e+00 : f32
    %32 = vector.broadcast %cst_12 : f32 to vector<16x128xf32>
    %33 = arith.maximumf %0, %32 : vector<16x128xf32>
    %34 = arith.mulf %0, %1 : vector<16x128xf32>
    %35 = arith.subf %33, %34 : vector<16x128xf32>
    %36 = math.log1p %5 : vector<16x128xf32>
    %37 = arith.addf %35, %36 : vector<16x128xf32>
    %38 = arith.mulf %37, %31 : vector<16x128xf32>
    %cst_13 = arith.constant dense<0.000000e+00> : vector<128xf32>
    %39 = vector.multi_reduction <add>, %38, %cst_13 [0] : vector<16x128xf32> to vector<128xf32>
    %40 = vector.shape_cast %39 : vector<128xf32> to vector<1x128xf32>
    %c0_14 = arith.constant 0 : index
    %c0_15 = arith.constant 0 : index
    %41 = vector.load %arg3[%c0_14, %c0_15] : memref<1x128xf32, #tpu.memory_space<vmem>>, vector<1x128xf32>
    tpu.vector_store %arg3[%c0_14, %c0_15], %40 {strides = array<i32>} : memref<1x128xf32, #tpu.memory_space<vmem>>, vector<1x128xf32>,
    return
  }
  func.func @transform_0(%arg0: i32) -> (i32, i32) {
    %c0_i32 = arith.constant 0 : i32
    %c0_i32_0 = arith.constant 0 : i32
    return %arg0, %c0_i32 : i32, i32
  }
  func.func @transform_1(%arg0: i32) -> (i32, i32) {
    %c0_i32 = arith.constant 0 : i32
    %c0_i32_0 = arith.constant 0 : i32
    return %arg0, %c0_i32 : i32, i32
  }
  func.func @transform_2(%arg0: i32) -> (i32, i32) {
    %c0_i32 = arith.constant 0 : i32
    %c0_i32_0 = arith.constant 0 : i32
    return %arg0, %c0_i32 : i32, i32
  }
}

</mosaic_0001>

<llo_original>
// kernel: tpu_custom_call.1
$region0: #{tpu_custom_call.1}
  #allocation0 [shape = 'u32[]', space=smem, size = 0x4, offset = 0x4, fixed_abs, tag = 'smem constant byte address 0x4 - core index']
  #allocation1 [shape = 'u32[144,128]{1,0:T(1,128)}', space=vmem, size = 0x12000, scoped, tag = 'internal scratch']
  %s0 = inlined_call_operand.hbm [shape: f32[16,128], index: 0, kind: input, shape index: {}]
  %s1 = inlined_call_operand.hbm [shape: f32[16,128], index: 1, kind: input, shape index: {}]
  %s2 = inlined_call_operand.hbm [shape: f32[1,128], index: 2, kind: output, shape index: {}]
  %s3 = sld [smem:[#allocation0]]
  $region26: #{tpu_custom_call.1} parent=0
    _
  %s5 = ssub.s32 1, %s3
  %s6 = scalar_select 0, %s5, %s3
  $region1: #{tpu_custom_call.1} parent=0
    #allocation2 [shape = 'u8[8192]{0}', space=vmem, size = 0x2000, scoped, tag = 'input window, operand 0, single buffered']
    #allocation3 [shape = 's32[1]{0}', space=sflag, size = 0x4, scoped, tag = 'scoped memory for tpu_custom_call.1']
    #allocation4 [shape = 's32[1]{0}', space=sflag, size = 0x4, scoped, tag = 'scoped memory for tpu_custom_call.1']
    #allocation5 [shape = 'u8[8192]{0}', space=vmem, size = 0x2000, scoped, tag = 'input window, operand 1, single buffered']
    #allocation6 [shape = 's32[1]{0}', space=sflag, size = 0x4, scoped, tag = 'scoped memory for tpu_custom_call.1']
    #allocation7 [shape = 'u8[512]{0}', space=vmem, size = 0x400, scoped, tag = 'output window, operand 0, single buffered']
    %7 = vsyncpa [#allocation3], 0
    %8 = vsyncpa [#allocation6], 0
    %9 = vsyncpa [#allocation4], 0
    // Predicated region
    $region2: #{tpu_custom_call.1} parent=1 // pred_check
      _
    $region3: #{tpu_custom_call.1} parent=1 // pred_check_branch
      %11 = sbr.rel (0) target = $region5
    $region4: #{tpu_custom_call.1} parent=1 // pred_region
      %s13 = ssub.s32 256, 256
      %14 = vsyncadd [#allocation3], %s13
      %s15 = sshll.u32 [#allocation2], 4
      %s16 = int_to_ptr.vmem [resolvable:$true] %s15
      %21 = dma.hbm_to_vmem [thread:$0]  %s0, 256, %s16, [#allocation3], 128, 128, 8
    $region5: #{tpu_custom_call.1} parent=1 // pred_fallthru
      _
    // Predicated region
    $region6: #{tpu_custom_call.1} parent=1 // pred_check
      _
    $region7: #{tpu_custom_call.1} parent=1 // pred_check_branch
      %23 = sbr.rel (0) target = $region9
    $region8: #{tpu_custom_call.1} parent=1 // pred_region
      %s25 = ssub.s32 256, 256
      %26 = vsyncadd [#allocation6], %s25
      %s27 = sshll.u32 [#allocation5], 4
      %s28 = int_to_ptr.vmem [resolvable:$true] %s27
      %33 = dma.hbm_to_vmem [thread:$0]  %s1, 256, %s28, [#allocation6], 128, 128, 8
    $region9: #{tpu_custom_call.1} parent=1 // pred_fallthru
      _
    // Predicated region
    $region10: #{tpu_custom_call.1} parent=1 // pred_check
      _
    $region11: #{tpu_custom_call.1} parent=1 // pred_check_branch
      %35 = sbr.rel (0) target = $region13
    $region12: #{tpu_custom_call.1} parent=1 // pred_region
      %36 = dma.done [#allocation3], 256
    $region13: #{tpu_custom_call.1} parent=1 // pred_fallthru
      _
    // Predicated region
    $region14: #{tpu_custom_call.1} parent=1 // pred_check
      _
    $region15: #{tpu_custom_call.1} parent=1 // pred_check_branch
      %38 = sbr.rel (0) target = $region17
    $region16: #{tpu_custom_call.1} parent=1 // pred_region
      %39 = dma.done [#allocation6], 256
    $region17: #{tpu_custom_call.1} parent=1 // pred_fallthru
      _
    %v40 = vld [vmem:[#allocation2] sm:$0xff]
    %v41 = vld [vmem:[#allocation2 + $0x8] sm:$0xff]
    %v42 = vld [vmem:[#allocation5] sm:$0xff]
    %v43 = vld [vmem:[#allocation5 + $0x8] sm:$0xff]
    %v44 = vand.u32 2147483647, %v40
    %v45 = vand.u32 2147483647, %v41
    %v46 = vsub.f32 0.0, %v44
    %v47 = vsub.f32 0.0, %v45
    %v48 = vmul.f32 %v46, 1.442695
    %v49 = vpow.pop %v48
    %v50 = vmul.f32 %v47, 1.442695
    %v51 = vpow.pop %v50
    %v52 = vadd.f32 %v49, 1.0
    %v53 = vadd.f32 %v51, 1.0
    %v54 = vrcp.pop %v52
    %v55 = vmul.f32 1.0, %v54
    %v56 = vrcp.pop %v53
    %v57 = vmul.f32 1.0, %v56
    %vm58 = vcmp.ge.f32.partialorder %v40, 0.0
    %vm59 = vcmp.ge.f32.partialorder %v41, 0.0
    %v60 = vsel %vm58, 1.0, %v49
    %v61 = vsel %vm59, 1.0, %v51
    %v62 = vmul.f32 %v60, %v55
    %v63 = vmul.f32 %v61, %v57
    %v64 = vsel %vm58, %v49, 1.0
    %v65 = vsel %vm59, %v51, 1.0
    %v66 = vmul.f32 %v64, %v55
    %v67 = vmul.f32 %v65, %v57
    %v68 = vmul.f32 %v66, %v42
    %v69 = vmul.f32 %v67, %v43
    %v70 = vsub.f32 1.0, %v42
    %v71 = vsub.f32 1.0, %v43
    %v72 = vmul.f32 %v62, %v70
    %v73 = vmul.f32 %v63, %v71
    %v74 = vadd.f32 %v68, %v72
    %v75 = vadd.f32 %v69, %v73
    %v76 = vmul.f32 %v74, %v74
    %v77 = vmul.f32 %v75, %v75
    %v78 = vmul.f32 %v42, 0.25
    %v79 = vmul.f32 %v43, 0.25
    %v80 = vmul.f32 %v70, 0.75
    %v81 = vmul.f32 %v71, 0.75
    %v82 = vadd.f32 %v78, %v80
    %v83 = vadd.f32 %v79, %v81
    %v84 = vmul.f32 %v82, %v76
    %v85 = vmul.f32 %v83, %v77
    %v86 = vmax.f32 %v40, 0.0
    %v87 = vmax.f32 %v41, 0.0
    %v88 = vmul.f32 %v40, %v42
    %v89 = vmul.f32 %v41, %v43
    %v90 = vsub.f32 %v86, %v88
    %v91 = vsub.f32 %v87, %v89
    %v92 = vadd.f32 %v49, 1.0
    %v93 = vlog2.pop %v92
    %v94 = vmul.f32 %v93, 0.6931472
    %v95 = vmul.f32 -0.5, %v49
    %v96 = vadd.f32 %v95, 1.0
    %v97 = vmul.f32 %v96, %v49
    %v98 = vand.u32 2147483647, %v49
    %vm99 = vcmp.lt.f32.partialorder %v98, 0.0004427343
    %v100 = vsel %vm99, %v97, %v94
    %v101 = vadd.f32 %v51, 1.0
    %v102 = vlog2.pop %v101
    %v103 = vmul.f32 %v102, 0.6931472
    %v104 = vmul.f32 -0.5, %v51
    %v105 = vadd.f32 %v104, 1.0
    %v106 = vmul.f32 %v105, %v51
    %v107 = vand.u32 2147483647, %v51
    %vm108 = vcmp.lt.f32.partialorder %v107, 0.0004427343
    %v109 = vsel %vm108, %v106, %v103
    %v110 = vadd.f32 %v90, %v100
    %v111 = vadd.f32 %v91, %v109
    %v112 = vmul.f32 %v110, %v84
    %v113 = vmul.f32 %v111, %v85
    %v114 = vadd.f32 %v112, %v113
    %v115 = vrot.slane %v114, 4
    %v116 = vadd.f32 %v114, %v115
    %v117 = vrot.slane %v116, 2
    %v118 = vadd.f32 %v116, %v117
    %v119 = vrot.slane %v118, 1
    %v120 = vadd.f32 %v118, %v119
    %121 = vst [vmem:[#allocation7] sm:$0x1] %v120
    // Predicated region
    $region18: #{tpu_custom_call.1} parent=1 // pred_check
      _
    $region19: #{tpu_custom_call.1} parent=1 // pred_check_branch
      %123 = sbr.rel (0) target = $region21
    $region20: #{tpu_custom_call.1} parent=1 // pred_region
      %s125 = ssub.s32 16, 16
      %126 = vsyncadd [#allocation4], %s125
      %s128 = sshll.u32 [#allocation7], 4
      %s129 = int_to_ptr.vmem [resolvable:$true] %s128
      %131 = dma.vmem_to_hbm [thread:$0]  %s129, 16, %s2, [#allocation4]
    $region21: #{tpu_custom_call.1} parent=1 // pred_fallthru
      _
    // Predicated region
    $region22: #{tpu_custom_call.1} parent=1 // pred_check
      _
    $region23: #{tpu_custom_call.1} parent=1 // pred_check_branch
      %133 = sbr.rel (0) target = $region25
    $region24: #{tpu_custom_call.1} parent=1 // pred_region
      %134 = dma.done [#allocation4], 16
    $region25: #{tpu_custom_call.1} parent=1 // pred_fallthru
      _
    %135 = vsyncpa [#allocation3], 1
    %136 = vsyncpa [#allocation6], 1
    %137 = vsyncpa [#allocation4], 1

</llo_original>
